<compile_context>
chip_gen: v7x
topology: tpu7x:2x2x1
jax: 0.10.0
libtpu: 0.0.40
codegen_flags: <defaults>
</compile_context>

<pallas_src>
import functools

import jax
import jax.numpy as jnp
from jax.experimental import pallas as pl
from jax.experimental.pallas import tpu as pltpu


def _round_up(x, m):
    return ((x + m - 1) // m) * m


def _decoder_kernel(x_ref, h0_ref, c0_ref, wih_ref, whh_ref, b_ref,
                    wfc_ref, bfc_ref,
                    pred_ref, hout_ref, cout_ref,
                    gx_scr, hall_scr, h_scr, c_scr,
                    *, seq_len, chunk, batch_pad, hidden_pad, has_tail):
    T, TC, Bp, H = seq_len, chunk, batch_pad, hidden_pad
    ci = pl.program_id(0)

    # Load the initial carry into the persistent VMEM carry on the first chunk.
    @pl.when(ci == 0)
    def _():
        h_scr[...] = h0_ref[...]
        c_scr[...] = c0_ref[...]

    # ---- Phase 1: hoisted input projection for the whole chunk (one matmul).
    # x_ref: (TC*Bp, I), wih_ref: (I, 4H)  ->  (TC*Bp, 4H)
    gx_scr[...] = (jnp.dot(x_ref[...], wih_ref[...],
                           preferred_element_type=jnp.float32) + b_ref[...])

    # ---- Phase 2: serial recurrence; only h @ W_hh stays on the critical path.
    def step(t, carry):
        h_prev, c_prev = carry
        row = pl.multiple_of(t * Bp, 8)          # Bp is a multiple of 8 sublanes
        gates = (gx_scr[pl.ds(row, Bp), :]
                 + jnp.dot(h_prev, whh_ref[...],
                           preferred_element_type=jnp.float32))

        # Gate layout reordered in the wrapper to [i, f, o, g]:
        # one lane-aligned sigmoid over [:3H], one tanh over [3H:].
        sig = jax.nn.sigmoid(gates[:, :3 * H])
        i_g = sig[:, 0 * H:1 * H]
        f_g = sig[:, 1 * H:2 * H]
        o_g = sig[:, 2 * H:3 * H]
        g_g = jnp.tanh(gates[:, 3 * H:])

        c_new = f_g * c_prev + i_g * g_g
        h_new = o_g * jnp.tanh(c_new)

        if has_tail:  # static: only emitted when T is not a multiple of chunk
            valid = (ci * TC + t) < T
            c_new = jnp.where(valid, c_new, c_prev)
            h_new = jnp.where(valid, h_new, h_prev)

        hall_scr[pl.ds(row, Bp), :] = h_new      # unmasked, H is lane-padded
        return h_new, c_new

    h_f, c_f = jax.lax.fori_loop(0, TC, step, (h_scr[...], c_scr[...]))
    h_scr[...] = h_f
    c_scr[...] = c_f

    # Final hidden/cell: same output block every chunk (resident accumulator);
    # the last chunk's value is what lands in HBM.
    hout_ref[...] = h_f.astype(hout_ref.dtype)
    cout_ref[...] = c_f.astype(cout_ref.dtype)

    # ---- Phase 3: deferred fc head for this chunk (one matmul, dense store).
    pred_ref[...] = (jnp.dot(hall_scr[...], wfc_ref[...],
                             preferred_element_type=jnp.float32)
                     + bfc_ref[...]).astype(pred_ref.dtype)


def decoder_forward(params, x, hidden, cell):
    """x: (B, T, input_size); hidden, cell: (1, B, hidden_size)."""
    B, T, I = x.shape
    H = params["w_hh"].shape[0]          # w_hh stored transposed: (H, 4H)
    O = params["w_fc"].shape[1]          # w_fc stored transposed: (H, O)

    Bp = max(8, _round_up(B, 8))         # sublane-pad batch
    Hp = max(128, _round_up(H, 128))     # lane-pad hidden
    Op = max(128, _round_up(O, 128))     # lane-pad fc output

    chunk = min(T, 32)                   # time-chunk size (per grid step)
    n_chunks = pl.cdiv(T, chunk)
    Tp = n_chunks * chunk
    has_tail = (Tp != T)

    # --- weight/bias prep: gate reorder [i,f,g,o] -> [i,f,o,g] + lane pad.
    def reorder_pad_gates(w):
        i, f, g, o = jnp.split(w, 4, axis=-1)
        pad = [(0, 0)] * (w.ndim - 1) + [(0, Hp - H)]
        return jnp.concatenate([jnp.pad(i, pad), jnp.pad(f, pad),
                                jnp.pad(o, pad), jnp.pad(g, pad)], axis=-1)

    w_ih = reorder_pad_gates(params["w_ih"])                        # (I, 4Hp)
    w_hh = jnp.pad(reorder_pad_gates(params["w_hh"]),
                   ((0, Hp - H), (0, 0)))                           # (Hp, 4Hp)
    bias = reorder_pad_gates((params["b_ih"] + params["b_hh"])
                             .reshape(1, 4 * H))                    # (1, 4Hp)
    w_fc = jnp.pad(params["w_fc"], ((0, Hp - H), (0, Op - O)))      # (Hp, Op)
    b_fc = jnp.pad(params["b_fc"].reshape(1, O), ((0, 0), (0, Op - O)))

    # --- activation prep: time-major, batch/time padded, flattened to 2-D.
    # TODO(synk): these transposes/pads are layout plumbing; callers providing
    # time-major (T, B, I) directly can skip them.
    x_tm = jnp.transpose(x, (1, 0, 2))                              # (T, B, I)
    x_tm = jnp.pad(x_tm, ((0, Tp - T), (0, Bp - B), (0, 0)))        # (Tp,Bp,I)
    x2d = x_tm.reshape(Tp * Bp, I)

    h0 = jnp.pad(hidden[0], ((0, Bp - B), (0, Hp - H)))             # (Bp, Hp)
    c0 = jnp.pad(cell[0], ((0, Bp - B), (0, Hp - H)))               # (Bp, Hp)

    kernel = functools.partial(_decoder_kernel, seq_len=T, chunk=chunk,
                               batch_pad=Bp, hidden_pad=Hp, has_tail=has_tail)

    # Conservative, explicit VMEM budget (stays inside v7x's 64 MiB VMEM).
    f32b = 4
    est = (2 * chunk * Bp * I * f32b             # x chunk, double buffered
           + 2 * chunk * Bp * Op * f32b          # pred chunk, double buffered
           + (I + Hp) * 4 * Hp * f32b + 4 * Hp * f32b
           + Hp * Op * f32b + Op * f32b
           + 4 * Bp * Hp * f32b                  # h0, c0, hout, cout
           + chunk * Bp * (4 * Hp + Hp) * f32b   # gx + hall scratch
           + 2 * Bp * Hp * f32b)                 # carry scratch
    vmem_limit = int(min(max(2 * est, 16 * 1024 * 1024), 48 * 1024 * 1024))

    pred2d, h_out, c_out = pl.pallas_call(
        kernel,
        out_shape=(
            jax.ShapeDtypeStruct((Tp * Bp, Op), x.dtype),   # prediction (2-D)
            jax.ShapeDtypeStruct((Bp, Hp), x.dtype),        # final hidden
            jax.ShapeDtypeStruct((Bp, Hp), x.dtype),        # final cell
        ),
        grid_spec=pltpu.PrefetchScalarGridSpec(
            num_scalar_prefetch=0,
            grid=(n_chunks,),
            in_specs=[
                pl.BlockSpec((chunk * Bp, I), lambda t: (t, 0)),    # x chunk
                pl.BlockSpec((Bp, Hp), lambda t: (0, 0)),           # h0
                pl.BlockSpec((Bp, Hp), lambda t: (0, 0)),           # c0
                pl.BlockSpec((I, 4 * Hp), lambda t: (0, 0)),        # w_ih
                pl.BlockSpec((Hp, 4 * Hp), lambda t: (0, 0)),       # w_hh
                pl.BlockSpec((1, 4 * Hp), lambda t: (0, 0)),        # fused bias
                pl.BlockSpec((Hp, Op), lambda t: (0, 0)),           # w_fc
                pl.BlockSpec((1, Op), lambda t: (0, 0)),            # b_fc
            ],
            out_specs=(
                pl.BlockSpec((chunk * Bp, Op), lambda t: (t, 0)),   # pred chunk
                pl.BlockSpec((Bp, Hp), lambda t: (0, 0)),           # hidden
                pl.BlockSpec((Bp, Hp), lambda t: (0, 0)),           # cell
            ),
            scratch_shapes=[
                pltpu.VMEM((chunk * Bp, 4 * Hp), jnp.float32),  # input gates
                pltpu.VMEM((chunk * Bp, Hp), jnp.float32),      # chunk hiddens
                pltpu.VMEM((Bp, Hp), jnp.float32),              # h carry
                pltpu.VMEM((Bp, Hp), jnp.float32),              # c carry
            ],
        ),
        compiler_params=pltpu.CompilerParams(
            dimension_semantics=("arbitrary",),
            vmem_limit_bytes=vmem_limit,
        ),
    )(x2d, h0, c0, w_ih, w_hh, bias, w_fc, b_fc)

    pred = pred2d.reshape(Tp, Bp, Op)[:T, :B, :O]        # drop time/batch/lane pad
    prediction = jnp.transpose(pred, (1, 0, 2))          # back to (B, T, O)
    return prediction, h_out[:B, :H][None], c_out[:B, :H][None]


def init_params(key, input_size, hidden_size, output_size):
    """Deterministic init mirroring nn.LSTM / nn.Linear shapes (num_layers=1)."""
    k = jax.random.split(key, 6)
    s = 1.0 / jnp.sqrt(hidden_size)
    u = lambda kk, shape, lim: jax.random.uniform(kk, shape, jnp.float32, -lim, lim)
    return {
        # stored transposed for the kernel: x @ W_ih^T, h @ W_hh^T
        "w_ih": u(k[0], (input_size, 4 * hidden_size), s),
        "w_hh": u(k[1], (hidden_size, 4 * hidden_size), s),
        "b_ih": u(k[2], (4 * hidden_size,), s),
        "b_hh": u(k[3], (4 * hidden_size,), s),
        # fc: hidden_size -> output_size (bidirectional=False), stored transposed
        "w_fc": u(k[4], (hidden_size, output_size), s),
        "b_fc": u(k[5], (output_size,), s),
    }


def decoder_reference(params, x, hidden, cell):
    """Pure-JAX reference of the same forward (PyTorch gate order), for checks."""
    H = params["w_hh"].shape[0]
    b = params["b_ih"] + params["b_hh"]

    def step(carry, x_t):
        h, c = carry
        gates = x_t @ params["w_ih"] + h @ params["w_hh"] + b
        i = jax.nn.sigmoid(gates[:, 0:H])
        f = jax.nn.sigmoid(gates[:, H:2 * H])
        g = jnp.tanh(gates[:, 2 * H:3 * H])
        o = jax.nn.sigmoid(gates[:, 3 * H:4 * H])
        c = f * c + i * g
        h = o * jnp.tanh(c)
        return (h, c), h

    (h_f, c_f), outs = jax.lax.scan(step, (hidden[0], cell[0]),
                                    jnp.transpose(x, (1, 0, 2)))
    out = jnp.transpose(outs, (1, 0, 2))
    pred = out @ params["w_fc"] + params["b_fc"]
    return pred, h_f[None], c_f[None]


if __name__ == "__main__":
    # num_layers = 1 (module branch without dropout).
    batch, seq, input_size, hidden_size, output_size = 2, 8, 16, 32, 16

    key = jax.random.PRNGKey(0)
    kp, kx, kh, kc = jax.random.split(key, 4)
    params = init_params(kp, input_size, hidden_size, output_size)

    x = jax.random.normal(kx, (batch, seq, input_size), jnp.float32)
    hidden = jax.random.normal(kh, (1, batch, hidden_size), jnp.float32)
    cell = jax.random.normal(kc, (1, batch, hidden_size), jnp.float32)

    pred, h_out, c_out = decoder_forward(params, x, hidden, cell)
    jax.block_until_ready((pred, h_out, c_out))

    # Verify against a pure-JAX reference.
    pred_r, h_r, c_r = decoder_reference(params, x, hidden, cell)
    assert pred.shape == (batch, seq, output_size)
    assert h_out.shape == (1, batch, hidden_size)
    assert c_out.shape == (1, batch, hidden_size)
    assert jnp.allclose(pred, pred_r, atol=1e-5, rtol=1e-5)
    assert jnp.allclose(h_out, h_r, atol=1e-5, rtol=1e-5)
    assert jnp.allclose(c_out, c_r, atol=1e-5, rtol=1e-5)

    print("KERNEL_OK")
</pallas_src>

<mosaic_0001>
module attributes {stable_mosaic.version = 11 : i64} {
  func.func @_decoder_kernel(%arg0: i32, %arg1: memref<64x16xf32, #tpu.memory_space<vmem>>, %arg2: memref<8x128xf32, #tpu.memory_space<vmem>>, %arg3: memref<8x128xf32, #tpu.memory_space<vmem>>, %arg4: memref<16x512xf32, #tpu.memory_space<vmem>>, %arg5: memref<128x512xf32, #tpu.memory_space<vmem>>, %arg6: memref<1x512xf32, #tpu.memory_space<vmem>>, %arg7: memref<128x128xf32, #tpu.memory_space<vmem>>, %arg8: memref<1x128xf32, #tpu.memory_space<vmem>>, %arg9: memref<64x128xf32, #tpu.memory_space<vmem>>, %arg10: memref<8x128xf32, #tpu.memory_space<vmem>>, %arg11: memref<8x128xf32, #tpu.memory_space<vmem>>, %arg12: memref<64x512xf32, #tpu.memory_space<vmem>>, %arg13: memref<64x128xf32, #tpu.memory_space<vmem>>, %arg14: memref<8x128xf32, #tpu.memory_space<vmem>>, %arg15: memref<8x128xf32, #tpu.memory_space<vmem>>) attributes {dimension_semantics = [#tpu.dimension_semantics<arbitrary>], iteration_bounds = array<i64: 1>, scalar_prefetch = 0 : i64, scratch_operands = 4 : i64, tpu.core_type = #tpu.core_type<tc>, window_params = [{transform_indices = @transform_0, window_bounds = array<i64: 64, 16>}, {pipeline_mode = #tpu.pipeline_mode<synchronous>, transform_indices = @transform_1, window_bounds = array<i64: 8, 128>}, {pipeline_mode = #tpu.pipeline_mode<synchronous>, transform_indices = @transform_2, window_bounds = array<i64: 8, 128>}, {pipeline_mode = #tpu.pipeline_mode<synchronous>, transform_indices = @transform_3, window_bounds = array<i64: 16, 512>}, {pipeline_mode = #tpu.pipeline_mode<synchronous>, transform_indices = @transform_4, window_bounds = array<i64: 128, 512>}, {pipeline_mode = #tpu.pipeline_mode<synchronous>, transform_indices = @transform_5, window_bounds = array<i64: 1, 512>}, {pipeline_mode = #tpu.pipeline_mode<synchronous>, transform_indices = @transform_6, window_bounds = array<i64: 128, 128>}, {pipeline_mode = #tpu.pipeline_mode<synchronous>, transform_indices = @transform_7, window_bounds = array<i64: 1, 128>}, {transform_indices = @transform_8, window_bounds = array<i64: 64, 128>}, {pipeline_mode = #tpu.pipeline_mode<synchronous>, transform_indices = @transform_9, window_bounds = array<i64: 8, 128>}, {pipeline_mode = #tpu.pipeline_mode<synchronous>, transform_indices = @transform_10, window_bounds = array<i64: 8, 128>}]} {
    %c0_i32 = arith.constant 0 : i32
    %0 = arith.cmpi eq, %arg0, %c0_i32 : i32
    %1 = arith.extui %0 : i1 to i32
    %c0_i32_0 = arith.constant 0 : i32
    %2 = arith.cmpi ne, %1, %c0_i32_0 : i32
    scf.if %2 {
      %c0_31 = arith.constant 0 : index
      %c0_32 = arith.constant 0 : index
      %25 = vector.load %arg2[%c0_31, %c0_32] : memref<8x128xf32, #tpu.memory_space<vmem>>, vector<8x128xf32>
      %c0_33 = arith.constant 0 : index
      %c0_34 = arith.constant 0 : index
      %26 = vector.load %arg14[%c0_33, %c0_34] : memref<8x128xf32, #tpu.memory_space<vmem>>, vector<8x128xf32>
      tpu.vector_store %arg14[%c0_33, %c0_34], %25 {strides = array<i32>} : memref<8x128xf32, #tpu.memory_space<vmem>>, vector<8x128xf32>,
      %c0_35 = arith.constant 0 : index
      %c0_36 = arith.constant 0 : index
      %27 = vector.load %arg3[%c0_35, %c0_36] : memref<8x128xf32, #tpu.memory_space<vmem>>, vector<8x128xf32>
      %c0_37 = arith.constant 0 : index
      %c0_38 = arith.constant 0 : index
      %28 = vector.load %arg15[%c0_37, %c0_38] : memref<8x128xf32, #tpu.memory_space<vmem>>, vector<8x128xf32>
      tpu.vector_store %arg15[%c0_37, %c0_38], %27 {strides = array<i32>} : memref<8x128xf32, #tpu.memory_space<vmem>>, vector<8x128xf32>,
    } else {
    }
    %c0 = arith.constant 0 : index
    %c0_1 = arith.constant 0 : index
    %3 = vector.load %arg1[%c0, %c0_1] : memref<64x16xf32, #tpu.memory_space<vmem>>, vector<64x16xf32>
    %c0_2 = arith.constant 0 : index
    %c0_3 = arith.constant 0 : index
    %4 = vector.load %arg4[%c0_2, %c0_3] : memref<16x512xf32, #tpu.memory_space<vmem>>, vector<16x512xf32>
    %cst = arith.constant dense<0.000000e+00> : vector<64x512xf32>
    %5 = tpu.matmul %3, %4, %cst {dimension_numbers = #tpu.dot_dimension_numbers<[1], [0], [0], [1], [0, 0, 1, 1], [], []>} : vector<64x16xf32>, vector<16x512xf32>, vector<64x512xf32> -> vector<64x512xf32>
    %c0_4 = arith.constant 0 : index
    %c0_5 = arith.constant 0 : index
    %6 = vector.load %arg6[%c0_4, %c0_5] : memref<1x512xf32, #tpu.memory_space<vmem>>, vector<1x512xf32>
    %7 = vector.broadcast %6 : vector<1x512xf32> to vector<64x512xf32>
    %8 = arith.addf %5, %7 : vector<64x512xf32>
    %c0_6 = arith.constant 0 : index
    %c0_7 = arith.constant 0 : index
    %9 = vector.load %arg12[%c0_6, %c0_7] : memref<64x512xf32, #tpu.memory_space<vmem>>, vector<64x512xf32>
    tpu.vector_store %arg12[%c0_6, %c0_7], %8 {strides = array<i32>} : memref<64x512xf32, #tpu.memory_space<vmem>>, vector<64x512xf32>,
    %c0_8 = arith.constant 0 : index
    %c0_9 = arith.constant 0 : index
    %10 = vector.load %arg14[%c0_8, %c0_9] : memref<8x128xf32, #tpu.memory_space<vmem>>, vector<8x128xf32>
    %c0_10 = arith.constant 0 : index
    %c0_11 = arith.constant 0 : index
    %11 = vector.load %arg15[%c0_10, %c0_11] : memref<8x128xf32, #tpu.memory_space<vmem>>, vector<8x128xf32>
    %c0_i32_12 = arith.constant 0 : i32
    %c8_i32 = arith.constant 8 : i32
    %12 = arith.addi %c0_i32_12, %c8_i32 : i32
    %c1_i32 = arith.constant 1 : i32
    %13:2 = scf.for %arg16 = %c0_i32_12 to %12 step %c1_i32 iter_args(%arg17 = %10, %arg18 = %11) -> (vector<8x128xf32>, vector<8x128xf32>)  : i32 {
      %c8_i32_31 = arith.constant 8 : i32
      %25 = arith.muli %arg16, %c8_i32_31 : i32
      %26 = tpu.assume_multiple %25, 8 : i32
      %27 = arith.index_cast %26 : i32 to index
      %c0_32 = arith.constant 0 : index
      %28 = vector.load %arg12[%27, %c0_32] : memref<64x512xf32, #tpu.memory_space<vmem>>, vector<8x512xf32>
      %c0_33 = arith.constant 0 : index
      %c0_34 = arith.constant 0 : index
      %29 = vector.load %arg5[%c0_33, %c0_34] : memref<128x512xf32, #tpu.memory_space<vmem>>, vector<128x512xf32>
      %cst_35 = arith.constant dense<0.000000e+00> : vector<8x512xf32>
      %30 = tpu.matmul %arg17, %29, %cst_35 {dimension_numbers = #tpu.dot_dimension_numbers<[1], [0], [0], [1], [0, 0, 1, 1], [], []>} : vector<8x128xf32>, vector<128x512xf32>, vector<8x512xf32> -> vector<8x512xf32>
      %31 = arith.addf %28, %30 : vector<8x512xf32>
      %32 = vector.extract_strided_slice %31 {offsets = [0, 0], sizes = [8, 384], strides = [1, 1]} : vector<8x512xf32> to vector<8x384xf32>
      %33 = arith.negf %32 : vector<8x384xf32>
      %34 = math.exp %33 : vector<8x384xf32>
      %cst_36 = arith.constant 1.000000e+00 : f32
      %35 = vector.broadcast %cst_36 : f32 to vector<8x384xf32>
      %36 = arith.addf %35, %34 : vector<8x384xf32>
      %37 = arith.divf %35, %36 : vector<8x384xf32>
      %38 = vector.extract_strided_slice %37 {offsets = [0, 0], sizes = [8, 128], strides = [1, 1]} : vector<8x384xf32> to vector<8x128xf32>
      %39 = vector.extract_strided_slice %37 {offsets = [0, 128], sizes = [8, 128], strides = [1, 1]} : vector<8x384xf32> to vector<8x128xf32>
      %40 = vector.extract_strided_slice %37 {offsets = [0, 256], sizes = [8, 128], strides = [1, 1]} : vector<8x384xf32> to vector<8x128xf32>
      %41 = vector.extract_strided_slice %31 {offsets = [0, 384], sizes = [8, 128], strides = [1, 1]} : vector<8x512xf32> to vector<8x128xf32>
      %42 = math.tanh %41 : vector<8x128xf32>
      %43 = arith.mulf %39, %arg18 : vector<8x128xf32>
      %44 = arith.mulf %38, %42 : vector<8x128xf32>
      %45 = arith.addf %43, %44 : vector<8x128xf32>
      %46 = math.tanh %45 : vector<8x128xf32>
      %47 = arith.mulf %40, %46 : vector<8x128xf32>
      %48 = arith.index_cast %26 : i32 to index
      %c0_37 = arith.constant 0 : index
      %49 = vector.load %arg13[%48, %c0_37] : memref<64x128xf32, #tpu.memory_space<vmem>>, vector<8x128xf32>
      tpu.vector_store %arg13[%48, %c0_37], %47 {strides = array<i32>} : memref<64x128xf32, #tpu.memory_space<vmem>>, vector<8x128xf32>,
      scf.yield %47, %45 : vector<8x128xf32>, vector<8x128xf32>
    }
    %c8_i32_13 = arith.constant 8 : i32
    %c0_14 = arith.constant 0 : index
    %c0_15 = arith.constant 0 : index
    %14 = vector.load %arg14[%c0_14, %c0_15] : memref<8x128xf32, #tpu.memory_space<vmem>>, vector<8x128xf32>
    tpu.vector_store %arg14[%c0_14, %c0_15], %13#0 {strides = array<i32>} : memref<8x128xf32, #tpu.memory_space<vmem>>, vector<8x128xf32>,
    %c0_16 = arith.constant 0 : index
    %c0_17 = arith.constant 0 : index
    %15 = vector.load %arg15[%c0_16, %c0_17] : memref<8x128xf32, #tpu.memory_space<vmem>>, vector<8x128xf32>
    tpu.vector_store %arg15[%c0_16, %c0_17], %13#1 {strides = array<i32>} : memref<8x128xf32, #tpu.memory_space<vmem>>, vector<8x128xf32>,
    %c0_18 = arith.constant 0 : index
    %c0_19 = arith.constant 0 : index
    %16 = vector.load %arg10[%c0_18, %c0_19] : memref<8x128xf32, #tpu.memory_space<vmem>>, vector<8x128xf32>
    tpu.vector_store %arg10[%c0_18, %c0_19], %13#0 {strides = array<i32>} : memref<8x128xf32, #tpu.memory_space<vmem>>, vector<8x128xf32>,
    %c0_20 = arith.constant 0 : index
    %c0_21 = arith.constant 0 : index
    %17 = vector.load %arg11[%c0_20, %c0_21] : memref<8x128xf32, #tpu.memory_space<vmem>>, vector<8x128xf32>
    tpu.vector_store %arg11[%c0_20, %c0_21], %13#1 {strides = array<i32>} : memref<8x128xf32, #tpu.memory_space<vmem>>, vector<8x128xf32>,
    %c0_22 = arith.constant 0 : index
    %c0_23 = arith.constant 0 : index
    %18 = vector.load %arg13[%c0_22, %c0_23] : memref<64x128xf32, #tpu.memory_space<vmem>>, vector<64x128xf32>
    %c0_24 = arith.constant 0 : index
    %c0_25 = arith.constant 0 : index
    %19 = vector.load %arg7[%c0_24, %c0_25] : memref<128x128xf32, #tpu.memory_space<vmem>>, vector<128x128xf32>
    %cst_26 = arith.constant dense<0.000000e+00> : vector<64x128xf32>
    %20 = tpu.matmul %18, %19, %cst_26 {dimension_numbers = #tpu.dot_dimension_numbers<[1], [0], [0], [1], [0, 0, 1, 1], [], []>} : vector<64x128xf32>, vector<128x128xf32>, vector<64x128xf32> -> vector<64x128xf32>
    %c0_27 = arith.constant 0 : index
    %c0_28 = arith.constant 0 : index
    %21 = vector.load %arg8[%c0_27, %c0_28] : memref<1x128xf32, #tpu.memory_space<vmem>>, vector<1x128xf32>
    %22 = vector.broadcast %21 : vector<1x128xf32> to vector<64x128xf32>
    %23 = arith.addf %20, %22 : vector<64x128xf32>
    %c0_29 = arith.constant 0 : index
    %c0_30 = arith.constant 0 : index
    %24 = vector.load %arg9[%c0_29, %c0_30] : memref<64x128xf32, #tpu.memory_space<vmem>>, vector<64x128xf32>
    tpu.vector_store %arg9[%c0_29, %c0_30], %23 {strides = array<i32>} : memref<64x128xf32, #tpu.memory_space<vmem>>, vector<64x128xf32>,
    return
  }
  func.func @transform_0(%arg0: i32) -> (i32, i32) {
    %c0_i32 = arith.constant 0 : i32
    %c0_i32_0 = arith.constant 0 : i32
    return %arg0, %c0_i32 : i32, i32
  }
  func.func @transform_1(%arg0: i32) -> (i32, i32) {
    %c0_i32 = arith.constant 0 : i32
    %c0_i32_0 = arith.constant 0 : i32
    %c0_i32_1 = arith.constant 0 : i32
    return %c0_i32, %c0_i32_0 : i32, i32
  }
  func.func @transform_2(%arg0: i32) -> (i32, i32) {
    %c0_i32 = arith.constant 0 : i32
    %c0_i32_0 = arith.constant 0 : i32
    %c0_i32_1 = arith.constant 0 : i32
    return %c0_i32, %c0_i32_0 : i32, i32
  }
  func.func @transform_3(%arg0: i32) -> (i32, i32) {
    %c0_i32 = arith.constant 0 : i32
    %c0_i32_0 = arith.constant 0 : i32
    %c0_i32_1 = arith.constant 0 : i32
    return %c0_i32, %c0_i32_0 : i32, i32
  }
  func.func @transform_4(%arg0: i32) -> (i32, i32) {
    %c0_i32 = arith.constant 0 : i32
    %c0_i32_0 = arith.constant 0 : i32
    %c0_i32_1 = arith.constant 0 : i32
    return %c0_i32, %c0_i32_0 : i32, i32
  }
  func.func @transform_5(%arg0: i32) -> (i32, i32) {
    %c0_i32 = arith.constant 0 : i32
    %c0_i32_0 = arith.constant 0 : i32
    %c0_i32_1 = arith.constant 0 : i32
    return %c0_i32, %c0_i32_0 : i32, i32
  }
  func.func @transform_6(%arg0: i32) -> (i32, i32) {
    %c0_i32 = arith.constant 0 : i32
    %c0_i32_0 = arith.constant 0 : i32
    %c0_i32_1 = arith.constant 0 : i32
    return %c0_i32, %c0_i32_0 : i32, i32
  }
  func.func @transform_7(%arg0: i32) -> (i32, i32) {
    %c0_i32 = arith.constant 0 : i32
    %c0_i32_0 = arith.constant 0 : i32
    %c0_i32_1 = arith.constant 0 : i32
    return %c0_i32, %c0_i32_0 : i32, i32
  }
  func.func @transform_8(%arg0: i32) -> (i32, i32) {
    %c0_i32 = arith.constant 0 : i32
    %c0_i32_0 = arith.constant 0 : i32
    return %arg0, %c0_i32 : i32, i32
  }
  func.func @transform_9(%arg0: i32) -> (i32, i32) {
    %c0_i32 = arith.constant 0 : i32
    %c0_i32_0 = arith.constant 0 : i32
    %c0_i32_1 = arith.constant 0 : i32
    return %c0_i32, %c0_i32_0 : i32, i32
  }
  func.func @transform_10(%arg0: i32) -> (i32, i32) {
    %c0_i32 = arith.constant 0 : i32
    %c0_i32_0 = arith.constant 0 : i32
    %c0_i32_1 = arith.constant 0 : i32
    return %c0_i32, %c0_i32_0 : i32, i32
  }
}

</mosaic_0001>

<llo_original>
// kernel: tpu_custom_call.1
$region0: #{tpu_custom_call.1}
  #allocation0 [shape = 'u32[]', space=smem, size = 0x4, offset = 0x4, fixed_abs, tag = 'smem constant byte address 0x4 - core index']
  #allocation1 [shape = 'u32[144,128]{1,0:T(1,128)}', space=vmem, size = 0x12000, scoped, tag = 'internal scratch']
  #allocation2 [shape = 'f32[64,512]{1,0:T(8,128)}', space=vmem, size = 0x20000, scoped, tag = 'scratch operand']
  #allocation3 [shape = 'f32[64,128]{1,0:T(8,128)}', space=vmem, size = 0x8000, scoped, tag = 'scratch operand']
  #allocation4 [shape = 'f32[8,128]{1,0:T(8,128)}', space=vmem, size = 0x1000, scoped, tag = 'scratch operand']
  #allocation5 [shape = 'f32[8,128]{1,0:T(8,128)}', space=vmem, size = 0x1000, scoped, tag = 'scratch operand']
  %s0 = inlined_call_operand.vmem [shape: f32[64,16], index: 0, kind: input, shape index: {}]
  %s1 = inlined_call_operand.vmem [shape: f32[8,128], index: 1, kind: input, shape index: {}]
  %s2 = inlined_call_operand.vmem [shape: f32[8,128], index: 2, kind: input, shape index: {}]
  %s3 = inlined_call_operand.vmem [shape: f32[16,512], index: 3, kind: input, shape index: {}]
  %s4 = inlined_call_operand.hbm [shape: f32[128,512], index: 4, kind: input, shape index: {}]
  %s5 = inlined_call_operand.vmem [shape: f32[1,512], index: 5, kind: input, shape index: {}]
  %s6 = inlined_call_operand.hbm [shape: f32[128,128], index: 6, kind: input, shape index: {}]
  %s7 = inlined_call_operand.vmem [shape: f32[1,128], index: 7, kind: input, shape index: {}]
  %s8 = inlined_call_operand.hbm [shape: f32[64,128], index: 8, kind: output, shape index: {0}]
  %s9 = inlined_call_operand.hbm [shape: f32[8,128], index: 9, kind: output, shape index: {1}]
  %s10 = inlined_call_operand.hbm [shape: f32[8,128], index: 10, kind: output, shape index: {2}]
  %11 = xla_tuple %s8, %s9, %s10
  %s12 = sld [smem:[#allocation0]]
  $region77: #{tpu_custom_call.1} parent=0
    _
  %s14 = ssub.s32 1, %s12
  %s15 = scalar_select 0, %s14, %s12
  $region1: #{tpu_custom_call.1} parent=0
    #allocation6 [shape = 'u8[262144]{0}', space=vmem, size = 0x40000, scoped, tag = 'input window, operand 4, single buffered']
    #allocation7 [shape = 's32[1]{0}', space=sflag, size = 0x4, scoped, tag = 'scoped memory for tpu_custom_call.1']
    #allocation8 [shape = 's32[1]{0}', space=sflag, size = 0x4, scoped, tag = 'scoped memory for tpu_custom_call.1']
    #allocation9 [shape = 'u8[65536]{0}', space=vmem, size = 0x10000, scoped, tag = 'input window, operand 6, single buffered']
    #allocation10 [shape = 's32[1]{0}', space=sflag, size = 0x4, scoped, tag = 'scoped memory for tpu_custom_call.1']
    #allocation11 [shape = 'u8[32768]{0}', space=vmem, size = 0x8000, scoped, tag = 'output window, operand 0, single buffered']
    #allocation12 [shape = 'u8[4096]{0}', space=vmem, size = 0x1000, scoped, tag = 'output window, operand 1, single buffered']
    #allocation13 [shape = 's32[1]{0}', space=sflag, size = 0x4, scoped, tag = 'scoped memory for tpu_custom_call.1']
    #allocation14 [shape = 'u8[4096]{0}', space=vmem, size = 0x1000, scoped, tag = 'output window, operand 2, single buffered']
    %16 = vsyncpa [#allocation7], 0
    %17 = vsyncpa [#allocation10], 0
    %18 = vsyncpa [#allocation8], 0
    %19 = vsyncpa [#allocation13], 0
    // Predicated region
    $region2: #{tpu_custom_call.1} parent=1 // pred_check
      _
    $region3: #{tpu_custom_call.1} parent=1 // pred_check_branch
      %21 = sbr.rel (0) target = $region5
    $region4: #{tpu_custom_call.1} parent=1 // pred_region
      _
    $region5: #{tpu_custom_call.1} parent=1 // pred_fallthru
      _
    // Predicated region
    $region6: #{tpu_custom_call.1} parent=1 // pred_check
      _
    $region7: #{tpu_custom_call.1} parent=1 // pred_check_branch
      %23 = sbr.rel (0) target = $region9
    $region8: #{tpu_custom_call.1} parent=1 // pred_region
      _
    $region9: #{tpu_custom_call.1} parent=1 // pred_fallthru
      _
    // Predicated region
    $region10: #{tpu_custom_call.1} parent=1 // pred_check
      _
    $region11: #{tpu_custom_call.1} parent=1 // pred_check_branch
      %25 = sbr.rel (0) target = $region13
    $region12: #{tpu_custom_call.1} parent=1 // pred_region
      _
    $region13: #{tpu_custom_call.1} parent=1 // pred_fallthru
      _
    // Predicated region
    $region14: #{tpu_custom_call.1} parent=1 // pred_check
      _
    $region15: #{tpu_custom_call.1} parent=1 // pred_check_branch
      %27 = sbr.rel (0) target = $region17
    $region16: #{tpu_custom_call.1} parent=1 // pred_region
      _
    $region17: #{tpu_custom_call.1} parent=1 // pred_fallthru
      _
    // Predicated region
    $region18: #{tpu_custom_call.1} parent=1 // pred_check
      _
    $region19: #{tpu_custom_call.1} parent=1 // pred_check_branch
      %29 = sbr.rel (0) target = $region21
    $region20: #{tpu_custom_call.1} parent=1 // pred_region
      %s31 = ssub.s32 8192, 8192
      %32 = vsyncadd [#allocation7], %s31
      %s33 = sshll.u32 [#allocation6], 4
      %s34 = int_to_ptr.vmem [resolvable:$true] %s33
      %39 = dma.hbm_to_vmem [thread:$0]  %s4, 8192, %s34, [#allocation7], 512, 512, 32
    $region21: #{tpu_custom_call.1} parent=1 // pred_fallthru
      _
    // Predicated region
    $region22: #{tpu_custom_call.1} parent=1 // pred_check
      _
    $region23: #{tpu_custom_call.1} parent=1 // pred_check_branch
      %41 = sbr.rel (0) target = $region25
    $region24: #{tpu_custom_call.1} parent=1 // pred_region
      _
    $region25: #{tpu_custom_call.1} parent=1 // pred_fallthru
      _
    // Predicated region
    $region26: #{tpu_custom_call.1} parent=1 // pred_check
      _
    $region27: #{tpu_custom_call.1} parent=1 // pred_check_branch
      %43 = sbr.rel (0) target = $region29
    $region28: #{tpu_custom_call.1} parent=1 // pred_region
      %s45 = ssub.s32 2048, 2048
      %46 = vsyncadd [#allocation10], %s45
      %s47 = sshll.u32 [#allocation9], 4
      %s48 = int_to_ptr.vmem [resolvable:$true] %s47
      %53 = dma.hbm_to_vmem [thread:$0]  %s6, 2048, %s48, [#allocation10], 128, 128, 8
    $region29: #{tpu_custom_call.1} parent=1 // pred_fallthru
      _
    // Predicated region
    $region30: #{tpu_custom_call.1} parent=1 // pred_check
      _
    $region31: #{tpu_custom_call.1} parent=1 // pred_check_branch
      %55 = sbr.rel (0) target = $region33
    $region32: #{tpu_custom_call.1} parent=1 // pred_region
      _
    $region33: #{tpu_custom_call.1} parent=1 // pred_fallthru
      _
    // Predicated region
    $region34: #{tpu_custom_call.1} parent=1 // pred_check
      _
    $region35: #{tpu_custom_call.1} parent=1 // pred_check_branch
      %57 = sbr.rel (0) target = $region37
    $region36: #{tpu_custom_call.1} parent=1 // pred_region
      %58 = dma.done [#allocation7], 8192
    $region37: #{tpu_custom_call.1} parent=1 // pred_fallthru
      _
    // Predicated region
    $region38: #{tpu_custom_call.1} parent=1 // pred_check
      _
    $region39: #{tpu_custom_call.1} parent=1 // pred_check_branch
      %60 = sbr.rel (0) target = $region41
    $region40: #{tpu_custom_call.1} parent=1 // pred_region
      %61 = dma.done [#allocation10], 2048
    $region41: #{tpu_custom_call.1} parent=1 // pred_fallthru
      _
    %p62 = scmp.eq.s32.totalorder 0, 0
    // Predicated region
    $region42: #{tpu_custom_call.1} parent=1 // pred_check
      %p63 = pneg %p62
    $region43: #{tpu_custom_call.1} parent=1 // pred_check_branch
      %65 = sbr.rel (%p63) target = $region45
    $region44: #{tpu_custom_call.1} parent=1 // pred_region
      %v66 = vld [vmem:[%s1] sm:$0xff]
      %67 = vst [vmem:[#allocation4] sm:$0xff] %v66
      %v68 = vld [vmem:[%s2] sm:$0xff]
      %69 = vst [vmem:[#allocation5] sm:$0xff] %v68
    $region45: #{tpu_custom_call.1} parent=1 // pred_fallthru
      _
    %v70 = vld [vmem:[%s0] sm:$0xff]
    %v71 = vld [vmem:[%s0 + $0x8] sm:$0xff]
    %v72 = vld [vmem:[%s0 + $0x10] sm:$0xff]
    %v73 = vld [vmem:[%s0 + $0x18] sm:$0xff]
    %v74 = vld [vmem:[%s0 + $0x20] sm:$0xff]
    %v75 = vld [vmem:[%s0 + $0x28] sm:$0xff]
    %v76 = vld [vmem:[%s0 + $0x30] sm:$0xff]
    %v77 = vld [vmem:[%s0 + $0x38] sm:$0xff]
    %v78 = vld [vmem:[%s3] sm:$0xff]
    %v79 = vld [vmem:[%s3 + $0x8] sm:$0xff]
    %v80 = vld [vmem:[%s3 + $0x10] sm:$0xff]
    %v81 = vld [vmem:[%s3 + $0x18] sm:$0xff]
    %v82 = vld [vmem:[%s3 + $0x20] sm:$0xff]
    %v83 = vld [vmem:[%s3 + $0x28] sm:$0xff]
    %v84 = vld [vmem:[%s3 + $0x30] sm:$0xff]
    %v85 = vld [vmem:[%s3 + $0x38] sm:$0xff]
    %v86 = vld [vmem:[%s5] sm:$0xf]
    %v88 = vlaneseq
    %v89 = vshrl.u32 %v88, 7
    %v90 = vsub.s32 0, %v89
    %v91 = vrot.slane %v86, %v90
    %v92 = vlaneseq
    %v93 = vshrl.u32 %v92, 7
    %v94 = vsub.s32 1, %v93
    %v95 = vrot.slane %v86, %v94
    %v96 = vlaneseq
    %v97 = vshrl.u32 %v96, 7
    %v98 = vsub.s32 2, %v97
    %v99 = vrot.slane %v86, %v98
    %v100 = vlaneseq
    %v101 = vshrl.u32 %v100, 7
    %v102 = vsub.s32 3, %v101
    %v103 = vrot.slane %v86, %v102
    %vm108 = vcmask 130048
    %v110 = vsel %vm108, %v70, 0
    %v113 = vsel %vm108, %v71, 0
    %v116 = vsel %vm108, %v72, 0
    %v119 = vsel %vm108, %v73, 0
    %v122 = vsel %vm108, %v74, 0
    %v125 = vsel %vm108, %v75, 0
    %v128 = vsel %vm108, %v76, 0
    %v131 = vsel %vm108, %v77, 0
    %133 = vmatprep.subr.mxu0 %v79
    %134 = vmatpush1.msra.mxu0 %v78
    %135 = vmatprep.subr.mxu0 %v83
    %136 = vmatpush1.msra.mxu0 %v82
    %137 = vmatprep.subr.mxu0 0.0
    %138 = vmatpush1.msra.mxu0 0.0
    %139 = vmatprep.subr.mxu0 0.0
    %140 = vmatpush1.msra.mxu0 0.0
    %141 = vmatprep.subr.mxu0 0.0
    %142 = vmatpush1.msra.mxu0 0.0
    %143 = vmatprep.subr.mxu0 0.0
    %144 = vmatpush1.msra.mxu0 0.0
    %145 = vmatprep.subr.mxu0 0.0
    %146 = vmatpush1.msra.mxu0 0.0
    %147 = vmatprep.subr.mxu0 0.0
    %148 = vmatpush1.msra.mxu0 0.0
    %149 = vmatprep.subr.mxu0 0.0
    %150 = vmatpush1.msra.mxu0 0.0
    %151 = vmatprep.subr.mxu0 0.0
    %152 = vmatpush1.msra.mxu0 0.0
    %153 = vmatprep.subr.mxu0 0.0
    %154 = vmatpush1.msra.mxu0 0.0
    %155 = vmatprep.subr.mxu0 0.0
    %156 = vmatpush1.msra.mxu0 0.0
    %157 = vmatprep.subr.mxu0 0.0
    %158 = vmatpush1.msra.mxu0 0.0
    %159 = vmatprep.subr.mxu0 0.0
    %160 = vmatpush1.msra.mxu0 0.0
    %161 = vmatprep.subr.mxu0 0.0
    %162 = vmatpush1.msra.mxu0 0.0
    %163 = vmatprep.subr.mxu0 0.0
    %164 = vmatpush1.msra.mxu0 0.0
    %165 = vmatprep.subr.mxu0 0.0
    %166 = vmatpush1.msra.mxu0 0.0
    %167 = vmatprep.subr.mxu0 0.0
    %168 = vmatpush1.msra.mxu0 0.0
    %169 = vmatprep.subr.mxu0 0.0
    %170 = vmatpush1.msra.mxu0 0.0
    %171 = vmatprep.subr.mxu0 0.0
    %172 = vmatpush1.msra.mxu0 0.0
    %173 = vmatprep.subr.mxu0 0.0
    %174 = vmatpush1.msra.mxu0 0.0
    %175 = vmatprep.subr.mxu0 0.0
    %176 = vmatpush1.msra.mxu0 0.0
    %177 = vmatprep.subr.mxu0 0.0
    %178 = vmatpush1.msra.mxu0 0.0
    %179 = vmatprep.subr.mxu0 0.0
    %180 = vmatpush1.msra.mxu0 0.0
    %181 = vmatprep.subr.mxu0 0.0
    %182 = vmatpush1.msra.mxu0 0.0
    %183 = vmatprep.subr.mxu0 0.0
    %184 = vmatpush1.msra.mxu0 0.0
    %185 = vmatprep.subr.mxu0 0.0
    %186 = vmatpush1.msra.mxu0 0.0
    %187 = vmatprep.subr.mxu0 0.0
    %188 = vmatpush1.msra.mxu0 0.0
    %189 = vmatprep.subr.mxu0 0.0
    %190 = vmatpush1.msra.mxu0 0.0
    %191 = vmatprep.subr.mxu0 0.0
    %192 = vmatpush1.msra.mxu0 0.0
    %193 = vmatprep.subr.mxu0 0.0
    %194 = vmatpush1.msra.mxu0 0.0
    %195 = vmatprep.subr.mxu0 0.0
    %196 = vmatpush1.msra.mxu0 0.0
    %197 = vmatprep.mubr.f32.mxu0 0.0
    %198 = vmatmul.mubr.f32.gmra.mrb[0].mxu0 %v110
    %v199 = vpop.f32.mrb[0].mxu0
    %v200 = vadd.f32 %v91, %v199
    %v201 = vpop.f32.mrb[0].mxu0
    %v202 = vadd.f32 %v95, %v201
    %203 = vmatprep.mubr.f32.mxu0 0.0
    %204 = vmatmul.mubr.f32.gmra.mrb[0].mxu0 %v113
    %v205 = vpop.f32.mrb[0].mxu0
    %v206 = vadd.f32 %v91, %v205
    %v207 = vpop.f32.mrb[0].mxu0
    %v208 = vadd.f32 %v95, %v207
    %209 = vmatprep.mubr.f32.mxu0 0.0
    %210 = vmatmul.mubr.f32.gmra.mrb[0].mxu0 %v116
    %v211 = vpop.f32.mrb[0].mxu0
    %v212 = vadd.f32 %v91, %v211
    %v213 = vpop.f32.mrb[0].mxu0
    %v214 = vadd.f32 %v95, %v213
    %215 = vmatprep.mubr.f32.mxu0 0.0
    %216 = vmatmul.mubr.f32.gmra.mrb[0].mxu0 %v119
    %v217 = vpop.f32.mrb[0].mxu0
    %v218 = vadd.f32 %v91, %v217
    %v219 = vpop.f32.mrb[0].mxu0
    %v220 = vadd.f32 %v95, %v219
    %221 = vmatprep.mubr.f32.mxu0 0.0
    %222 = vmatmul.mubr.f32.gmra.mrb[0].mxu0 %v122
    %v223 = vpop.f32.mrb[0].mxu0
    %v224 = vadd.f32 %v91, %v223
    %v225 = vpop.f32.mrb[0].mxu0
    %v226 = vadd.f32 %v95, %v225
    %227 = vmatprep.mubr.f32.mxu0 0.0
    %228 = vmatmul.mubr.f32.gmra.mrb[0].mxu0 %v125
    %v229 = vpop.f32.mrb[0].mxu0
    %v230 = vadd.f32 %v91, %v229
    %v231 = vpop.f32.mrb[0].mxu0
    %v232 = vadd.f32 %v95, %v231
    %233 = vmatprep.mubr.f32.mxu0 0.0
    %234 = vmatmul.mubr.f32.gmra.mrb[0].mxu0 %v128
    %v235 = vpop.f32.mrb[0].mxu0
    %v236 = vadd.f32 %v91, %v235
    %v237 = vpop.f32.mrb[0].mxu0
    %v238 = vadd.f32 %v95, %v237
    %239 = vmatprep.mubr.f32.mxu0 0.0
    %240 = vmatmul.mubr.f32.gmra.mrb[0].mxu0 %v131
    %v241 = vpop.f32.mrb[0].mxu0
    %v242 = vadd.f32 %v91, %v241
    %v243 = vpop.f32.mrb[0].mxu0
    %v244 = vadd.f32 %v95, %v243
    %245 = vdwg.mxu0
    %246 = vmatprep.subr.mxu0 %v81
    %247 = vmatpush1.msra.mxu0 %v80
    %248 = vmatprep.subr.mxu0 %v85
    %249 = vmatpush1.msra.mxu0 %v84
    %250 = vmatprep.subr.mxu0 0.0
    %251 = vmatpush1.msra.mxu0 0.0
    %252 = vmatprep.subr.mxu0 0.0
    %253 = vmatpush1.msra.mxu0 0.0
    %254 = vmatprep.subr.mxu0 0.0
    %255 = vmatpush1.msra.mxu0 0.0
    %256 = vmatprep.subr.mxu0 0.0
    %257 = vmatpush1.msra.mxu0 0.0
    %258 = vmatprep.subr.mxu0 0.0
    %259 = vmatpush1.msra.mxu0 0.0
    %260 = vmatprep.subr.mxu0 0.0
    %261 = vmatpush1.msra.mxu0 0.0
    %262 = vmatprep.subr.mxu0 0.0
    %263 = vmatpush1.msra.mxu0 0.0
    %264 = vmatprep.subr.mxu0 0.0
    %265 = vmatpush1.msra.mxu0 0.0
    %266 = vmatprep.subr.mxu0 0.0
    %267 = vmatpush1.msra.mxu0 0.0
    %268 = vmatprep.subr.mxu0 0.0
    %269 = vmatpush1.msra.mxu0 0.0
    %270 = vmatprep.subr.mxu0 0.0
    %271 = vmatpush1.msra.mxu0 0.0
    %272 = vmatprep.subr.mxu0 0.0
    %273 = vmatpush1.msra.mxu0 0.0
    %274 = vmatprep.subr.mxu0 0.0
    %275 = vmatpush1.msra.mxu0 0.0
    %276 = vmatprep.subr.mxu0 0.0
    %277 = vmatpush1.msra.mxu0 0.0
    %278 = vmatprep.subr.mxu0 0.0
    %279 = vmatpush1.msra.mxu0 0.0
    %280 = vmatprep.subr.mxu0 0.0
    %281 = vmatpush1.msra.mxu0 0.0
    %282 = vmatprep.subr.mxu0 0.0
    %283 = vmatpush1.msra.mxu0 0.0
    %284 = vmatprep.subr.mxu0 0.0
    %285 = vmatpush1.msra.mxu0 0.0
    %286 = vmatprep.subr.mxu0 0.0
    %287 = vmatpush1.msra.mxu0 0.0
    %288 = vmatprep.subr.mxu0 0.0
    %289 = vmatpush1.msra.mxu0 0.0
    %290 = vmatprep.subr.mxu0 0.0
    %291 = vmatpush1.msra.mxu0 0.0
    %292 = vmatprep.subr.mxu0 0.0
    %293 = vmatpush1.msra.mxu0 0.0
    %294 = vmatprep.subr.mxu0 0.0
    %295 = vmatpush1.msra.mxu0 0.0
    %296 = vmatprep.subr.mxu0 0.0
    %297 = vmatpush1.msra.mxu0 0.0
    %298 = vmatprep.subr.mxu0 0.0
    %299 = vmatpush1.msra.mxu0 0.0
    %300 = vmatprep.subr.mxu0 0.0
    %301 = vmatpush1.msra.mxu0 0.0
    %302 = vmatprep.subr.mxu0 0.0
    %303 = vmatpush1.msra.mxu0 0.0
    %304 = vmatprep.subr.mxu0 0.0
    %305 = vmatpush1.msra.mxu0 0.0
    %306 = vmatprep.subr.mxu0 0.0
    %307 = vmatpush1.msra.mxu0 0.0
    %308 = vmatprep.subr.mxu0 0.0
    %309 = vmatpush1.msra.mxu0 0.0
    %310 = vmatprep.mubr.f32.mxu0 0.0
    %311 = vmatmul.mubr.f32.gmra.mrb[0].mxu0 %v110
    %v312 = vpop.f32.mrb[0].mxu0
    %v313 = vadd.f32 %v99, %v312
    %v314 = vpop.f32.mrb[0].mxu0
    %v315 = vadd.f32 %v103, %v314
    %316 = vmatprep.mubr.f32.mxu0 0.0
    %317 = vmatmul.mubr.f32.gmra.mrb[0].mxu0 %v113
    %v318 = vpop.f32.mrb[0].mxu0
    %v319 = vadd.f32 %v99, %v318
    %v320 = vpop.f32.mrb[0].mxu0
    %v321 = vadd.f32 %v103, %v320
    %322 = vmatprep.mubr.f32.mxu0 0.0
    %323 = vmatmul.mubr.f32.gmra.mrb[0].mxu0 %v116
    %v324 = vpop.f32.mrb[0].mxu0
    %v325 = vadd.f32 %v99, %v324
    %v326 = vpop.f32.mrb[0].mxu0
    %v327 = vadd.f32 %v103, %v326
    %328 = vmatprep.mubr.f32.mxu0 0.0
    %329 = vmatmul.mubr.f32.gmra.mrb[0].mxu0 %v119
    %v330 = vpop.f32.mrb[0].mxu0
    %v331 = vadd.f32 %v99, %v330
    %v332 = vpop.f32.mrb[0].mxu0
    %v333 = vadd.f32 %v103, %v332
    %334 = vmatprep.mubr.f32.mxu0 0.0
    %335 = vmatmul.mubr.f32.gmra.mrb[0].mxu0 %v122
    %v336 = vpop.f32.mrb[0].mxu0
    %v337 = vadd.f32 %v99, %v336
    %v338 = vpop.f32.mrb[0].mxu0
    %v339 = vadd.f32 %v103, %v338
    %340 = vmatprep.mubr.f32.mxu0 0.0
    %341 = vmatmul.mubr.f32.gmra.mrb[0].mxu0 %v125
    %v342 = vpop.f32.mrb[0].mxu0
    %v343 = vadd.f32 %v99, %v342
    %v344 = vpop.f32.mrb[0].mxu0
    %v345 = vadd.f32 %v103, %v344
    %346 = vmatprep.mubr.f32.mxu0 0.0
    %347 = vmatmul.mubr.f32.gmra.mrb[0].mxu0 %v128
    %v348 = vpop.f32.mrb[0].mxu0
    %v349 = vadd.f32 %v99, %v348
    %v350 = vpop.f32.mrb[0].mxu0
    %v351 = vadd.f32 %v103, %v350
    %352 = vmatprep.mubr.f32.mxu0 0.0
    %353 = vmatmul.mubr.f32.gmra.mrb[0].mxu0 %v131
    %v354 = vpop.f32.mrb[0].mxu0
    %v355 = vadd.f32 %v99, %v354
    %v356 = vpop.f32.mrb[0].mxu0
    %v357 = vadd.f32 %v103, %v356
    %358 = vdwg.mxu0
    %359 = vst [vmem:[#allocation2] sm:$0xff] %v200
    %360 = vst [vmem:[#allocation2 + $0x8] sm:$0xff] %v202
    %361 = vst [vmem:[#allocation2 + $0x10] sm:$0xff] %v313
    %362 = vst [vmem:[#allocation2 + $0x18] sm:$0xff] %v315
    %363 = vst [vmem:[#allocation2 + $0x20] sm:$0xff] %v206
    %364 = vst [vmem:[#allocation2 + $0x28] sm:$0xff] %v208
    %365 = vst [vmem:[#allocation2 + $0x30] sm:$0xff] %v319
    %366 = vst [vmem:[#allocation2 + $0x38] sm:$0xff] %v321
    %367 = vst [vmem:[#allocation2 + $0x40] sm:$0xff] %v212
    %368 = vst [vmem:[#allocation2 + $0x48] sm:$0xff] %v214
    %369 = vst [vmem:[#allocation2 + $0x50] sm:$0xff] %v325
    %370 = vst [vmem:[#allocation2 + $0x58] sm:$0xff] %v327
    %371 = vst [vmem:[#allocation2 + $0x60] sm:$0xff] %v218
    %372 = vst [vmem:[#allocation2 + $0x68] sm:$0xff] %v220
    %373 = vst [vmem:[#allocation2 + $0x70] sm:$0xff] %v331
    %374 = vst [vmem:[#allocation2 + $0x78] sm:$0xff] %v333
    %375 = vst [vmem:[#allocation2 + $0x80] sm:$0xff] %v224
    %376 = vst [vmem:[#allocation2 + $0x88] sm:$0xff] %v226
    %377 = vst [vmem:[#allocation2 + $0x90] sm:$0xff] %v337
    %378 = vst [vmem:[#allocation2 + $0x98] sm:$0xff] %v339
    %379 = vst [vmem:[#allocation2 + $0xa0] sm:$0xff] %v230
    %380 = vst [vmem:[#allocation2 + $0xa8] sm:$0xff] %v232
    %381 = vst [vmem:[#allocation2 + $0xb0] sm:$0xff] %v343
    %382 = vst [vmem:[#allocation2 + $0xb8] sm:$0xff] %v345
    %383 = vst [vmem:[#allocation2 + $0xc0] sm:$0xff] %v236
    %384 = vst [vmem:[#allocation2 + $0xc8] sm:$0xff] %v238
    %385 = vst [vmem:[#allocation2 + $0xd0] sm:$0xff] %v349
    %386 = vst [vmem:[#allocation2 + $0xd8] sm:$0xff] %v351
    %387 = vst [vmem:[#allocation2 + $0xe0] sm:$0xff] %v242
    %388 = vst [vmem:[#allocation2 + $0xe8] sm:$0xff] %v244
    %389 = vst [vmem:[#allocation2 + $0xf0] sm:$0xff] %v355
    %390 = vst [vmem:[#allocation2 + $0xf8] sm:$0xff] %v357
    %v391 = vld [vmem:[#allocation4] sm:$0xff]
    %v392 = vld [vmem:[#allocation5] sm:$0xff]
    loop: start=0, step=1, limit=8
    $region46: #{tpu_custom_call.1} parent=1 // loop_pre_header
      _
    $region47: #{tpu_custom_call.1} parent=1 // loop_header
      %s394 = sphi 0, %s398
      %p395 = scmp.ge.s32.totalorder %s394, 8
      %v399 = vphi %v391, %v644
      %v400 = vphi %v392, %v642
    $region48: #{tpu_custom_call.1} parent=1 // loop_header_branch
      %397 = sbr.rel (%p395) target = $region52
    $region49: #{tpu_custom_call.1} parent=1 // loop_body
      %s401 = smul.u32 %s394, 8
      %s402 = sshra.s32 %s401, 3
      %s403 = sand.u32 %s401, 7
      %s404 = smul.u32 %s402, 4
      %s405 = smul.addr %s404, 8
      %s406 = scalar_lea.vmem [#allocation2], %s405
      %v407 = vld [vmem:[%s406] sm:$0xff]
      %v408 = vld [vmem:[%s406 + $0x8] sm:$0xff]
      %v409 = vld [vmem:[%s406 + $0x10] sm:$0xff]
      %v410 = vld [vmem:[%s406 + $0x18] sm:$0xff]
      %v411 = vld [vmem:[#allocation6] sm:$0xff]
      %v412 = vld [vmem:[#allocation6 + $0x8] sm:$0xff]
      %v413 = vld [vmem:[#allocation6 + $0x10] sm:$0xff]
      %v414 = vld [vmem:[#allocation6 + $0x18] sm:$0xff]
      %v415 = vld [vmem:[#allocation6 + $0x20] sm:$0xff]
      %v416 = vld [vmem:[#allocation6 + $0x28] sm:$0xff]
      %v417 = vld [vmem:[#allocation6 + $0x30] sm:$0xff]
      %v418 = vld [vmem:[#allocation6 + $0x38] sm:$0xff]
      %v419 = vld [vmem:[#allocation6 + $0x40] sm:$0xff]
      %v420 = vld [vmem:[#allocation6 + $0x48] sm:$0xff]
      %v421 = vld [vmem:[#allocation6 + $0x50] sm:$0xff]
      %v422 = vld [vmem:[#allocation6 + $0x58] sm:$0xff]
      %v423 = vld [vmem:[#allocation6 + $0x60] sm:$0xff]
      %v424 = vld [vmem:[#allocation6 + $0x68] sm:$0xff]
      %v425 = vld [vmem:[#allocation6 + $0x70] sm:$0xff]
      %v426 = vld [vmem:[#allocation6 + $0x78] sm:$0xff]
      %v427 = vld [vmem:[#allocation6 + $0x80] sm:$0xff]
      %v428 = vld [vmem:[#allocation6 + $0x88] sm:$0xff]
      %v429 = vld [vmem:[#allocation6 + $0x90] sm:$0xff]
      %v430 = vld [vmem:[#allocation6 + $0x98] sm:$0xff]
      %v431 = vld [vmem:[#allocation6 + $0xa0] sm:$0xff]
      %v432 = vld [vmem:[#allocation6 + $0xa8] sm:$0xff]
      %v433 = vld [vmem:[#allocation6 + $0xb0] sm:$0xff]
      %v434 = vld [vmem:[#allocation6 + $0xb8] sm:$0xff]
      %v435 = vld [vmem:[#allocation6 + $0xc0] sm:$0xff]
      %v436 = vld [vmem:[#allocation6 + $0xc8] sm:$0xff]
      %v437 = vld [vmem:[#allocation6 + $0xd0] sm:$0xff]
      %v438 = vld [vmem:[#allocation6 + $0xd8] sm:$0xff]
      %v439 = vld [vmem:[#allocation6 + $0xe0] sm:$0xff]
      %v440 = vld [vmem:[#allocation6 + $0xe8] sm:$0xff]
      %v441 = vld [vmem:[#allocation6 + $0xf0] sm:$0xff]
      %v442 = vld [vmem:[#allocation6 + $0xf8] sm:$0xff]
      %v443 = vld [vmem:[#allocation6 + $0x100] sm:$0xff]
      %v444 = vld [vmem:[#allocation6 + $0x108] sm:$0xff]
      %v445 = vld [vmem:[#allocation6 + $0x110] sm:$0xff]
      %v446 = vld [vmem:[#allocation6 + $0x118] sm:$0xff]
      %v447 = vld [vmem:[#allocation6 + $0x120] sm:$0xff]
      %v448 = vld [vmem:[#allocation6 + $0x128] sm:$0xff]
      %v449 = vld [vmem:[#allocation6 + $0x130] sm:$0xff]
      %v450 = vld [vmem:[#allocation6 + $0x138] sm:$0xff]
      %v451 = vld [vmem:[#allocation6 + $0x140] sm:$0xff]
      %v452 = vld [vmem:[#allocation6 + $0x148] sm:$0xff]
      %v453 = vld [vmem:[#allocation6 + $0x150] sm:$0xff]
      %v454 = vld [vmem:[#allocation6 + $0x158] sm:$0xff]
      %v455 = vld [vmem:[#allocation6 + $0x160] sm:$0xff]
      %v456 = vld [vmem:[#allocation6 + $0x168] sm:$0xff]
      %v457 = vld [vmem:[#allocation6 + $0x170] sm:$0xff]
      %v458 = vld [vmem:[#allocation6 + $0x178] sm:$0xff]
      %v459 = vld [vmem:[#allocation6 + $0x180] sm:$0xff]
      %v460 = vld [vmem:[#allocation6 + $0x188] sm:$0xff]
      %v461 = vld [vmem:[#allocation6 + $0x190] sm:$0xff]
      %v462 = vld [vmem:[#allocation6 + $0x198] sm:$0xff]
      %v463 = vld [vmem:[#allocation6 + $0x1a0] sm:$0xff]
      %v464 = vld [vmem:[#allocation6 + $0x1a8] sm:$0xff]
      %v465 = vld [vmem:[#allocation6 + $0x1b0] sm:$0xff]
      %v466 = vld [vmem:[#allocation6 + $0x1b8] sm:$0xff]
      %v467 = vld [vmem:[#allocation6 + $0x1c0] sm:$0xff]
      %v468 = vld [vmem:[#allocation6 + $0x1c8] sm:$0xff]
      %v469 = vld [vmem:[#allocation6 + $0x1d0] sm:$0xff]
      %v470 = vld [vmem:[#allocation6 + $0x1d8] sm:$0xff]
      %v471 = vld [vmem:[#allocation6 + $0x1e0] sm:$0xff]
      %v472 = vld [vmem:[#allocation6 + $0x1e8] sm:$0xff]
      %v473 = vld [vmem:[#allocation6 + $0x1f0] sm:$0xff]
      %v474 = vld [vmem:[#allocation6 + $0x1f8] sm:$0xff]
      %475 = vmatprep.subr.mxu0 %v412
      %476 = vmatpush1.msra.mxu0 %v411
      %477 = vmatprep.subr.mxu0 %v416
      %478 = vmatpush1.msra.mxu0 %v415
      %479 = vmatprep.subr.mxu0 %v420
      %480 = vmatpush1.msra.mxu0 %v419
      %481 = vmatprep.subr.mxu0 %v424
      %482 = vmatpush1.msra.mxu0 %v423
      %483 = vmatprep.subr.mxu0 %v428
      %484 = vmatpush1.msra.mxu0 %v427
      %485 = vmatprep.subr.mxu0 %v432
      %486 = vmatpush1.msra.mxu0 %v431
      %487 = vmatprep.subr.mxu0 %v436
      %488 = vmatpush1.msra.mxu0 %v435
      %489 = vmatprep.subr.mxu0 %v440
      %490 = vmatpush1.msra.mxu0 %v439
      %491 = vmatprep.subr.mxu0 %v444
      %492 = vmatpush1.msra.mxu0 %v443
      %493 = vmatprep.subr.mxu0 %v448
      %494 = vmatpush1.msra.mxu0 %v447
      %495 = vmatprep.subr.mxu0 %v452
      %496 = vmatpush1.msra.mxu0 %v451
      %497 = vmatprep.subr.mxu0 %v456
      %498 = vmatpush1.msra.mxu0 %v455
      %499 = vmatprep.subr.mxu0 %v460
      %500 = vmatpush1.msra.mxu0 %v459
      %501 = vmatprep.subr.mxu0 %v464
      %502 = vmatpush1.msra.mxu0 %v463
      %503 = vmatprep.subr.mxu0 %v468
      %504 = vmatpush1.msra.mxu0 %v467
      %505 = vmatprep.subr.mxu0 %v472
      %506 = vmatpush1.msra.mxu0 %v471
      %507 = vmatprep.subr.mxu0 0.0
      %508 = vmatpush1.msra.mxu0 0.0
      %509 = vmatprep.subr.mxu0 0.0
      %510 = vmatpush1.msra.mxu0 0.0
      %511 = vmatprep.subr.mxu0 0.0
      %512 = vmatpush1.msra.mxu0 0.0
      %513 = vmatprep.subr.mxu0 0.0
      %514 = vmatpush1.msra.mxu0 0.0
      %515 = vmatprep.subr.mxu0 0.0
      %516 = vmatpush1.msra.mxu0 0.0
      %517 = vmatprep.subr.mxu0 0.0
      %518 = vmatpush1.msra.mxu0 0.0
      %519 = vmatprep.subr.mxu0 0.0
      %520 = vmatpush1.msra.mxu0 0.0
      %521 = vmatprep.subr.mxu0 0.0
      %522 = vmatpush1.msra.mxu0 0.0
      %523 = vmatprep.subr.mxu0 0.0
      %524 = vmatpush1.msra.mxu0 0.0
      %525 = vmatprep.subr.mxu0 0.0
      %526 = vmatpush1.msra.mxu0 0.0
      %527 = vmatprep.subr.mxu0 0.0
      %528 = vmatpush1.msra.mxu0 0.0
      %529 = vmatprep.subr.mxu0 0.0
      %530 = vmatpush1.msra.mxu0 0.0
      %531 = vmatprep.subr.mxu0 0.0
      %532 = vmatpush1.msra.mxu0 0.0
      %533 = vmatprep.subr.mxu0 0.0
      %534 = vmatpush1.msra.mxu0 0.0
      %535 = vmatprep.subr.mxu0 0.0
      %536 = vmatpush1.msra.mxu0 0.0
      %537 = vmatprep.subr.mxu0 0.0
      %538 = vmatpush1.msra.mxu0 0.0
      %539 = vmatprep.mubr.f32.mxu0 0.0
      %540 = vmatmul.mubr.f32.gmra.mrb[0].mxu0 %v399
      %v541 = vpop.f32.mrb[0].mxu0
      %v542 = vadd.f32 0.0, %v541
      %v543 = vpop.f32.mrb[0].mxu0
      %v544 = vadd.f32 0.0, %v543
      %545 = vdwg.mxu0
      %546 = vmatprep.subr.mxu0 %v414
      %547 = vmatpush1.msra.mxu0 %v413
      %548 = vmatprep.subr.mxu0 %v418
      %549 = vmatpush1.msra.mxu0 %v417
      %550 = vmatprep.subr.mxu0 %v422
      %551 = vmatpush1.msra.mxu0 %v421
      %552 = vmatprep.subr.mxu0 %v426
      %553 = vmatpush1.msra.mxu0 %v425
      %554 = vmatprep.subr.mxu0 %v430
      %555 = vmatpush1.msra.mxu0 %v429
      %556 = vmatprep.subr.mxu0 %v434
      %557 = vmatpush1.msra.mxu0 %v433
      %558 = vmatprep.subr.mxu0 %v438
      %559 = vmatpush1.msra.mxu0 %v437
      %560 = vmatprep.subr.mxu0 %v442
      %561 = vmatpush1.msra.mxu0 %v441
      %562 = vmatprep.subr.mxu0 %v446
      %563 = vmatpush1.msra.mxu0 %v445
      %564 = vmatprep.subr.mxu0 %v450
      %565 = vmatpush1.msra.mxu0 %v449
      %566 = vmatprep.subr.mxu0 %v454
      %567 = vmatpush1.msra.mxu0 %v453
      %568 = vmatprep.subr.mxu0 %v458
      %569 = vmatpush1.msra.mxu0 %v457
      %570 = vmatprep.subr.mxu0 %v462
      %571 = vmatpush1.msra.mxu0 %v461
      %572 = vmatprep.subr.mxu0 %v466
      %573 = vmatpush1.msra.mxu0 %v465
      %574 = vmatprep.subr.mxu0 %v470
      %575 = vmatpush1.msra.mxu0 %v469
      %576 = vmatprep.subr.mxu0 %v474
      %577 = vmatpush1.msra.mxu0 %v473
      %578 = vmatprep.subr.mxu0 0.0
      %579 = vmatpush1.msra.mxu0 0.0
      %580 = vmatprep.subr.mxu0 0.0
      %581 = vmatpush1.msra.mxu0 0.0
      %582 = vmatprep.subr.mxu0 0.0
      %583 = vmatpush1.msra.mxu0 0.0
      %584 = vmatprep.subr.mxu0 0.0
      %585 = vmatpush1.msra.mxu0 0.0
      %586 = vmatprep.subr.mxu0 0.0
      %587 = vmatpush1.msra.mxu0 0.0
      %588 = vmatprep.subr.mxu0 0.0
      %589 = vmatpush1.msra.mxu0 0.0
      %590 = vmatprep.subr.mxu0 0.0
      %591 = vmatpush1.msra.mxu0 0.0
      %592 = vmatprep.subr.mxu0 0.0
      %593 = vmatpush1.msra.mxu0 0.0
      %594 = vmatprep.subr.mxu0 0.0
      %595 = vmatpush1.msra.mxu0 0.0
      %596 = vmatprep.subr.mxu0 0.0
      %597 = vmatpush1.msra.mxu0 0.0
      %598 = vmatprep.subr.mxu0 0.0
      %599 = vmatpush1.msra.mxu0 0.0
      %600 = vmatprep.subr.mxu0 0.0
      %601 = vmatpush1.msra.mxu0 0.0
      %602 = vmatprep.subr.mxu0 0.0
      %603 = vmatpush1.msra.mxu0 0.0
      %604 = vmatprep.subr.mxu0 0.0
      %605 = vmatpush1.msra.mxu0 0.0
      %606 = vmatprep.subr.mxu0 0.0
      %607 = vmatpush1.msra.mxu0 0.0
      %608 = vmatprep.subr.mxu0 0.0
      %609 = vmatpush1.msra.mxu0 0.0
      %610 = vmatprep.mubr.f32.mxu0 0.0
      %611 = vmatmul.mubr.f32.gmra.mrb[0].mxu0 %v399
      %v612 = vpop.f32.mrb[0].mxu0
      %v613 = vadd.f32 0.0, %v612
      %v614 = vpop.f32.mrb[0].mxu0
      %v615 = vadd.f32 0.0, %v614
      %616 = vdwg.mxu0
      %v617 = vadd.f32 %v407, %v542
      %v618 = vadd.f32 %v408, %v544
      %v619 = vadd.f32 %v409, %v613
      %v620 = vadd.f32 %v410, %v615
      %v621 = vxor.u32 %v617, 2147483648
      %v622 = vxor.u32 %v618, 2147483648
      %v623 = vxor.u32 %v619, 2147483648
      %v624 = vmul.f32 %v621, 1.442695
      %v625 = vpow.pop %v624
      %v626 = vmul.f32 %v622, 1.442695
      %v627 = vpow.pop %v626
      %v628 = vmul.f32 %v623, 1.442695
      %v629 = vpow.pop %v628
      %v630 = vadd.f32 %v625, 1.0
      %v631 = vadd.f32 %v627, 1.0
      %v632 = vadd.f32 %v629, 1.0
      %v633 = vrcp.pop %v630
      %v634 = vmul.f32 1.0, %v633
      %v635 = vrcp.pop %v631
      %v636 = vmul.f32 1.0, %v635
      %v637 = vrcp.pop %v632
      %v638 = vmul.f32 1.0, %v637
      %v639 = vtanh.pop %v620
      %v640 = vmul.f32 %v636, %v400
      %v641 = vmul.f32 %v634, %v639
      %v642 = vadd.f32 %v640, %v641
      %v643 = vtanh.pop %v642
      %v644 = vmul.f32 %v638, %v643
      %s645 = scalar_lea.vmem [#allocation3], %s401
      %646 = vst [vmem:[%s645] sm:$0xff] %v644
    $region50: #{tpu_custom_call.1} parent=1 // loop_footer
      %s398 = sadd.s32 1, %s394
    $region51: #{tpu_custom_call.1} parent=1 // loop_footer_branch
      %393 = sbr.rel target = $region47
    $region52: #{tpu_custom_call.1} parent=1 // loop_exit
      _
    %647 = vst [vmem:[#allocation4] sm:$0xff] %v399
    %648 = vst [vmem:[#allocation5] sm:$0xff] %v400
    %649 = vst [vmem:[#allocation12] sm:$0xff] %v399
    %650 = vst [vmem:[#allocation14] sm:$0xff] %v400
    %v651 = vld [vmem:[#allocation3] sm:$0xff]
    %v652 = vld [vmem:[#allocation3 + $0x8] sm:$0xff]
    %v653 = vld [vmem:[#allocation3 + $0x10] sm:$0xff]
    %v654 = vld [vmem:[#allocation3 + $0x18] sm:$0xff]
    %v655 = vld [vmem:[#allocation3 + $0x20] sm:$0xff]
    %v656 = vld [vmem:[#allocation3 + $0x28] sm:$0xff]
    %v657 = vld [vmem:[#allocation3 + $0x30] sm:$0xff]
    %v658 = vld [vmem:[#allocation3 + $0x38] sm:$0xff]
    %v659 = vld [vmem:[#allocation9] sm:$0xff]
    %v660 = vld [vmem:[#allocation9 + $0x8] sm:$0xff]
    %v661 = vld [vmem:[#allocation9 + $0x10] sm:$0xff]
    %v662 = vld [vmem:[#allocation9 + $0x18] sm:$0xff]
    %v663 = vld [vmem:[#allocation9 + $0x20] sm:$0xff]
    %v664 = vld [vmem:[#allocation9 + $0x28] sm:$0xff]
    %v665 = vld [vmem:[#allocation9 + $0x30] sm:$0xff]
    %v666 = vld [vmem:[#allocation9 + $0x38] sm:$0xff]
    %v667 = vld [vmem:[#allocation9 + $0x40] sm:$0xff]
    %v668 = vld [vmem:[#allocation9 + $0x48] sm:$0xff]
    %v669 = vld [vmem:[#allocation9 + $0x50] sm:$0xff]
    %v670 = vld [vmem:[#allocation9 + $0x58] sm:$0xff]
    %v671 = vld [vmem:[#allocation9 + $0x60] sm:$0xff]
    %v672 = vld [vmem:[#allocation9 + $0x68] sm:$0xff]
    %v673 = vld [vmem:[#allocation9 + $0x70] sm:$0xff]
    %v674 = vld [vmem:[#allocation9 + $0x78] sm:$0xff]
    %v675 = vld [vmem:[%s7] sm:$0x1]
    %v677 = vlaneseq
    %v678 = vshrl.u32 %v677, 7
    %v679 = vsub.s32 0, %v678
    %v680 = vrot.slane %v675, %v679
    %682 = vmatprep.subr.mxu0 0.0
    %683 = vmatpush1.msra.mxu0 %v659
    %684 = vmatprep.subr.mxu0 0.0
    %685 = vmatpush1.msra.mxu0 %v660
    %686 = vmatprep.subr.mxu0 0.0
    %687 = vmatpush1.msra.mxu0 %v661
    %688 = vmatprep.subr.mxu0 0.0
    %689 = vmatpush1.msra.mxu0 %v662
    %690 = vmatprep.subr.mxu0 0.0
    %691 = vmatpush1.msra.mxu0 %v663
    %692 = vmatprep.subr.mxu0 0.0
    %693 = vmatpush1.msra.mxu0 %v664
    %694 = vmatprep.subr.mxu0 0.0
    %695 = vmatpush1.msra.mxu0 %v665
    %696 = vmatprep.subr.mxu0 0.0
    %697 = vmatpush1.msra.mxu0 %v666
    %698 = vmatprep.subr.mxu0 0.0
    %699 = vmatpush1.msra.mxu0 %v667
    %700 = vmatprep.subr.mxu0 0.0
    %701 = vmatpush1.msra.mxu0 %v668
    %702 = vmatprep.subr.mxu0 0.0
    %703 = vmatpush1.msra.mxu0 %v669
    %704 = vmatprep.subr.mxu0 0.0
    %705 = vmatpush1.msra.mxu0 %v670
    %706 = vmatprep.subr.mxu0 0.0
    %707 = vmatpush1.msra.mxu0 %v671
    %708 = vmatprep.subr.mxu0 0.0
    %709 = vmatpush1.msra.mxu0 %v672
    %710 = vmatprep.subr.mxu0 0.0
    %711 = vmatpush1.msra.mxu0 %v673
    %712 = vmatprep.subr.mxu0 0.0
    %713 = vmatpush1.msra.mxu0 %v674
    %714 = vmatprep.subr.mxu0 0.0
    %715 = vmatpush1.msra.mxu0 0.0
    %716 = vmatprep.subr.mxu0 0.0
    %717 = vmatpush1.msra.mxu0 0.0
    %718 = vmatprep.subr.mxu0 0.0
    %719 = vmatpush1.msra.mxu0 0.0
    %720 = vmatprep.subr.mxu0 0.0
    %721 = vmatpush1.msra.mxu0 0.0
    %722 = vmatprep.subr.mxu0 0.0
    %723 = vmatpush1.msra.mxu0 0.0
    %724 = vmatprep.subr.mxu0 0.0
    %725 = vmatpush1.msra.mxu0 0.0
    %726 = vmatprep.subr.mxu0 0.0
    %727 = vmatpush1.msra.mxu0 0.0
    %728 = vmatprep.subr.mxu0 0.0
    %729 = vmatpush1.msra.mxu0 0.0
    %730 = vmatprep.subr.mxu0 0.0
    %731 = vmatpush1.msra.mxu0 0.0
    %732 = vmatprep.subr.mxu0 0.0
    %733 = vmatpush1.msra.mxu0 0.0
    %734 = vmatprep.subr.mxu0 0.0
    %735 = vmatpush1.msra.mxu0 0.0
    %736 = vmatprep.subr.mxu0 0.0
    %737 = vmatpush1.msra.mxu0 0.0
    %738 = vmatprep.subr.mxu0 0.0
    %739 = vmatpush1.msra.mxu0 0.0
    %740 = vmatprep.subr.mxu0 0.0
    %741 = vmatpush1.msra.mxu0 0.0
    %742 = vmatprep.subr.mxu0 0.0
    %743 = vmatpush1.msra.mxu0 0.0
    %744 = vmatprep.subr.mxu0 0.0
    %745 = vmatpush1.msra.mxu0 0.0
    %746 = vmatprep.mubr.f32.mxu0 0.0
    %747 = vmatmul.mubr.f32.gmra.mrb[0].mxu0 %v651
    %v748 = vpop.f32.mrb[0].mxu0
    %v749 = vadd.f32 %v680, %v748
    %v750 = vpop.f32.mrb[0].mxu0
    %751 = vmatprep.mubr.f32.mxu0 0.0
    %752 = vmatmul.mubr.f32.gmra.mrb[0].mxu0 %v652
    %v753 = vpop.f32.mrb[0].mxu0
    %v754 = vadd.f32 %v680, %v753
    %v755 = vpop.f32.mrb[0].mxu0
    %756 = vmatprep.mubr.f32.mxu0 0.0
    %757 = vmatmul.mubr.f32.gmra.mrb[0].mxu0 %v653
    %v758 = vpop.f32.mrb[0].mxu0
    %v759 = vadd.f32 %v680, %v758
    %v760 = vpop.f32.mrb[0].mxu0
    %761 = vmatprep.mubr.f32.mxu0 0.0
    %762 = vmatmul.mubr.f32.gmra.mrb[0].mxu0 %v654
    %v763 = vpop.f32.mrb[0].mxu0
    %v764 = vadd.f32 %v680, %v763
    %v765 = vpop.f32.mrb[0].mxu0
    %766 = vmatprep.mubr.f32.mxu0 0.0
    %767 = vmatmul.mubr.f32.gmra.mrb[0].mxu0 %v655
    %v768 = vpop.f32.mrb[0].mxu0
    %v769 = vadd.f32 %v680, %v768
    %v770 = vpop.f32.mrb[0].mxu0
    %771 = vmatprep.mubr.f32.mxu0 0.0
    %772 = vmatmul.mubr.f32.gmra.mrb[0].mxu0 %v656
    %v773 = vpop.f32.mrb[0].mxu0
    %v774 = vadd.f32 %v680, %v773
    %v775 = vpop.f32.mrb[0].mxu0
    %776 = vmatprep.mubr.f32.mxu0 0.0
    %777 = vmatmul.mubr.f32.gmra.mrb[0].mxu0 %v657
    %v778 = vpop.f32.mrb[0].mxu0
    %v779 = vadd.f32 %v680, %v778
    %v780 = vpop.f32.mrb[0].mxu0
    %781 = vmatprep.mubr.f32.mxu0 0.0
    %782 = vmatmul.mubr.f32.gmra.mrb[0].mxu0 %v658
    %v783 = vpop.f32.mrb[0].mxu0
    %v784 = vadd.f32 %v680, %v783
    %v785 = vpop.f32.mrb[0].mxu0
    %786 = vdwg.mxu0
    %787 = vst [vmem:[#allocation11] sm:$0xff] %v749
    %788 = vst [vmem:[#allocation11 + $0x8] sm:$0xff] %v754
    %789 = vst [vmem:[#allocation11 + $0x10] sm:$0xff] %v759
    %790 = vst [vmem:[#allocation11 + $0x18] sm:$0xff] %v764
    %791 = vst [vmem:[#allocation11 + $0x20] sm:$0xff] %v769
    %792 = vst [vmem:[#allocation11 + $0x28] sm:$0xff] %v774
    %793 = vst [vmem:[#allocation11 + $0x30] sm:$0xff] %v779
    %794 = vst [vmem:[#allocation11 + $0x38] sm:$0xff] %v784
    // Predicated region
    $region53: #{tpu_custom_call.1} parent=1 // pred_check
      _
    $region54: #{tpu_custom_call.1} parent=1 // pred_check_branch
      %796 = sbr.rel (0) target = $region56
    $region55: #{tpu_custom_call.1} parent=1 // pred_region
      %s798 = ssub.s32 1024, 1024
      %799 = vsyncadd [#allocation8], %s798
      %s800 = sshll.u32 [#allocation11], 4
      %s801 = int_to_ptr.vmem [resolvable:$true] %s800
      %806 = dma.vmem_to_hbm [thread:$0]  %s801, 1024, %s8, [#allocation8], 128, 128, 8
    $region56: #{tpu_custom_call.1} parent=1 // pred_fallthru
      _
    // Predicated region
    $region57: #{tpu_custom_call.1} parent=1 // pred_check
      _
    $region58: #{tpu_custom_call.1} parent=1 // pred_check_branch
      %808 = sbr.rel (0) target = $region60
    $region59: #{tpu_custom_call.1} parent=1 // pred_region
      %s810 = ssub.s32 128, 128
      %811 = vsyncadd [#allocation13], %s810
      %s813 = sshll.u32 [#allocation12], 4
      %s814 = int_to_ptr.vmem [resolvable:$true] %s813
      %816 = dma.vmem_to_hbm [thread:$0]  %s814, 128, %s9, [#allocation13]
    $region60: #{tpu_custom_call.1} parent=1 // pred_fallthru
      _
    // Predicated region
    $region61: #{tpu_custom_call.1} parent=1 // pred_check
      _
    $region62: #{tpu_custom_call.1} parent=1 // pred_check_branch
      %818 = sbr.rel (0) target = $region64
    $region63: #{tpu_custom_call.1} parent=1 // pred_region
      %s820 = ssub.s32 128, 128
      %821 = vsyncadd [#allocation13], %s820
      %s823 = sshll.u32 [#allocation14], 4
      %s824 = int_to_ptr.vmem [resolvable:$true] %s823
      %826 = dma.vmem_to_hbm [thread:$0]  %s824, 128, %s10, [#allocation13]
    $region64: #{tpu_custom_call.1} parent=1 // pred_fallthru
      _
    // Predicated region
    $region65: #{tpu_custom_call.1} parent=1 // pred_check
      _
    $region66: #{tpu_custom_call.1} parent=1 // pred_check_branch
      %828 = sbr.rel (0) target = $region68
    $region67: #{tpu_custom_call.1} parent=1 // pred_region
      %829 = dma.done [#allocation8], 1024
    $region68: #{tpu_custom_call.1} parent=1 // pred_fallthru
      _
    // Predicated region
    $region69: #{tpu_custom_call.1} parent=1 // pred_check
      _
    $region70: #{tpu_custom_call.1} parent=1 // pred_check_branch
      %831 = sbr.rel (0) target = $region72
    $region71: #{tpu_custom_call.1} parent=1 // pred_region
      %832 = dma.done [#allocation13], 128
    $region72: #{tpu_custom_call.1} parent=1 // pred_fallthru
      _
    // Predicated region
    $region73: #{tpu_custom_call.1} parent=1 // pred_check
      _
    $region74: #{tpu_custom_call.1} parent=1 // pred_check_branch
      %834 = sbr.rel (0) target = $region76
    $region75: #{tpu_custom_call.1} parent=1 // pred_region
      %835 = dma.done [#allocation13], 128
    $region76: #{tpu_custom_call.1} parent=1 // pred_fallthru
      _
    %836 = vsyncpa [#allocation7], 1
    %837 = vsyncpa [#allocation10], 1
    %838 = vsyncpa [#allocation8], 1
    %839 = vsyncpa [#allocation13], 1

</llo_original>
